<compile_context>
chip_gen: v5e
topology: v5e:2x2
jax: 0.10.0
libtpu: 0.0.40
codegen_flags: <defaults>
</compile_context>

<pallas_src>
import jax
import jax.numpy as jnp
from jax.experimental import pallas as pl
from jax.experimental.pallas import tpu as pltpu

LANES = 128          # lane width of a vreg
HIDDEN = 16          # fc1 out_features
MAX_TR = 2048        # 2048*128*4 B = 1 MiB per f32 tile; ~4 MiB double-buffered


def _mlp_kernel(w1_ref, b1_ref, w2_ref, b2_ref, x_ref, o_ref):
    # w1_ref/b1_ref/w2_ref: (16,) f32 in SMEM, b2_ref: (1,) f32 in SMEM
    # x_ref / o_ref: (TR, 128) f32 lane-dense batch tiles in VMEM
    # TODO(synk): on v6e/v7x a packed-bf16 variant of this loop would ~2x VALU
    # throughput, at the cost of bf16-level output precision.
    x = x_ref[...]
    # j = 0 term initializes the accumulator (b2 folded in).
    h = jnp.maximum(x * w1_ref[0] + b1_ref[0], 0.0)          # fc1 + ReLU
    acc = h * w2_ref[0] + b2_ref[0]                           # prediction contraction
    for j in range(1, HIDDEN):                                # unrolled VPU FMAs/lane
        h = jnp.maximum(x * w1_ref[j] + b1_ref[j], 0.0)
        acc = acc + h * w2_ref[j]
    o_ref[...] = acc.astype(o_ref.dtype)


def mlp_forward(x, w1, b1, w2, b2):
    """x: (N, 1) f32.  w1: (16, 1), b1: (16,), w2: (1, 16), b2: (1,) — torch layout."""
    N = x.shape[0]
    dtype = x.dtype

    def round_up(a, b):
        return (a + b - 1) // b * b

    rows = pl.cdiv(N, LANES)                       # lane-dense rows needed
    if rows <= 8:
        TR = 8                                     # single (8, 128) tile; grid == 1
    else:
        # Ensure grid >= 2 (two-TC split on v7x) while keeping TR sublane-aligned
        # and capped so each tile stays ~1 MiB.
        TR = min(MAX_TR, round_up(pl.cdiv(rows, 2), 8))
    grid = (pl.cdiv(rows, TR),)                    # last tile may be partial

    # Pad only to the next multiple of 128 (no-op when N % 128 == 0); all
    # reshapes below are metadata-only on contiguous data.
    pad = rows * LANES - N
    x_flat = x.reshape(-1)
    if pad:
        x_flat = jnp.pad(x_flat, (0, pad))
    x2d = x_flat.reshape(rows, LANES)

    smem = pl.BlockSpec(memory_space=pltpu.SMEM)   # tiny params, resident whole kernel
    tile = lambda: pl.BlockSpec((TR, LANES), lambda i: (i, 0))

    out2d = pl.pallas_call(
        _mlp_kernel,
        out_shape=jax.ShapeDtypeStruct((rows, LANES), dtype),
        grid=grid,
        in_specs=[smem, smem, smem, smem, tile()],
        out_specs=tile(),
        compiler_params=pltpu.CompilerParams(
            dimension_semantics=("parallel",),     # shard batch tiles across TCs (v7x)
            vmem_limit_bytes=32 * 1024 * 1024,
        ),
    )(
        w1.reshape(HIDDEN).astype(jnp.float32),    # fc1 weight (in_features == 1)
        b1.reshape(HIDDEN).astype(jnp.float32),
        w2.reshape(HIDDEN).astype(jnp.float32),    # prediction weight
        b2.reshape(1).astype(jnp.float32),
        x2d,
    )
    # reshape(-1) is metadata-only; the [:N] slice is the only output-sized copy.
    return out2d.reshape(-1)[:N].reshape(N, 1)


def _init_params(key):
    # torch.nn.Linear default init: U(-1/sqrt(fan_in), 1/sqrt(fan_in)).
    k1, k2, k3, k4 = jax.random.split(key, 4)
    bound1 = 1.0 / jnp.sqrt(1.0)      # fc1 fan_in = 1
    bound2 = 1.0 / jnp.sqrt(16.0)     # prediction fan_in = 16
    w1 = jax.random.uniform(k1, (16, 1), jnp.float32, -bound1, bound1)
    b1 = jax.random.uniform(k2, (16,), jnp.float32, -bound1, bound1)
    w2 = jax.random.uniform(k3, (1, 16), jnp.float32, -bound2, bound2)
    b2 = jax.random.uniform(k4, (1,), jnp.float32, -bound2, bound2)
    return w1, b1, w2, b2


def _ref_forward(x, w1, b1, w2, b2):
    h = jnp.maximum(x @ w1.T + b1, 0.0)
    return h @ w2.T + b2


if __name__ == "__main__":
    key = jax.random.PRNGKey(0)
    kx, kp = jax.random.split(key)
    w1, b1, w2, b2 = _init_params(kp)

    # Small test (N=8): single partial (1-row) tile, pad on both lanes and rows.
    N = 8
    x = jax.random.normal(kx, (N, 1), jnp.float32)
    out = mlp_forward(x, w1, b1, w2, b2)
    jax.block_until_ready(out)
    ref = _ref_forward(x, w1, b1, w2, b2)
    assert out.shape == (N, 1)
    assert jnp.allclose(out, ref, atol=1e-5, rtol=1e-5)

    # Non-multiple-of-128 batch: verifies lane-pad handling + output slicing.
    N2 = 300
    x2 = jax.random.normal(jax.random.PRNGKey(1), (N2, 1), jnp.float32)
    out2 = mlp_forward(x2, w1, b1, w2, b2)
    jax.block_until_ready(out2)
    ref2 = _ref_forward(x2, w1, b1, w2, b2)
    assert out2.shape == (N2, 1)
    assert jnp.allclose(out2, ref2, atol=1e-5, rtol=1e-5)

    # Larger batch: exercises a multi-tile grid (>= 2 tiles -> two-TC split on
    # v7x) with a partial last tile and a no-op pad path (N % 128 != 0 here, so
    # the pad is still exercised; rows > 8 so TR = cdiv(rows, 2) rounded to 8).
    N3 = 5000
    x3 = jax.random.normal(jax.random.PRNGKey(2), (N3, 1), jnp.float32)
    out3 = mlp_forward(x3, w1, b1, w2, b2)
    jax.block_until_ready(out3)
    ref3 = _ref_forward(x3, w1, b1, w2, b2)
    assert out3.shape == (N3, 1)
    assert jnp.allclose(out3, ref3, atol=1e-5, rtol=1e-5)

    # TODO(synk): for very small N the XLA-fused elementwise graph is cheaper
    # than any kernel launch; a production wrapper could dispatch on N.
    print("KERNEL_OK")
</pallas_src>

<mosaic_0001>
module attributes {stable_mosaic.version = 11 : i64} {
  func.func @_mlp_kernel(%arg0: i32, %arg1: memref<16xf32, #tpu.memory_space<smem>>, %arg2: memref<16xf32, #tpu.memory_space<smem>>, %arg3: memref<16xf32, #tpu.memory_space<smem>>, %arg4: memref<1xf32, #tpu.memory_space<smem>>, %arg5: memref<8x128xf32, #tpu.memory_space<vmem>>, %arg6: memref<8x128xf32, #tpu.memory_space<vmem>>) attributes {dimension_semantics = [#tpu.dimension_semantics<parallel>], iteration_bounds = array<i64: 1>, scalar_prefetch = 0 : i64, scratch_operands = 0 : i64, tpu.core_type = #tpu.core_type<tc>, window_params = [{transform_indices = @transform_0, window_bounds = array<i64: 16>}, {transform_indices = @transform_1, window_bounds = array<i64: 16>}, {transform_indices = @transform_2, window_bounds = array<i64: 16>}, {transform_indices = @transform_3, window_bounds = array<i64: 1>}, {transform_indices = @transform_4, window_bounds = array<i64: 8, 128>}, {transform_indices = @transform_5, window_bounds = array<i64: 8, 128>}]} {
    %c0 = arith.constant 0 : index
    %c0_0 = arith.constant 0 : index
    %0 = vector.load %arg5[%c0, %c0_0] : memref<8x128xf32, #tpu.memory_space<vmem>>, vector<8x128xf32>
    %c0_1 = arith.constant 0 : index
    %1 = memref.load %arg1[%c0_1] : memref<16xf32, #tpu.memory_space<smem>>
    %2 = vector.broadcast %1 : f32 to vector<8x128xf32>
    %3 = arith.mulf %0, %2 : vector<8x128xf32>
    %c0_2 = arith.constant 0 : index
    %4 = memref.load %arg2[%c0_2] : memref<16xf32, #tpu.memory_space<smem>>
    %5 = vector.broadcast %4 : f32 to vector<8x128xf32>
    %6 = arith.addf %3, %5 : vector<8x128xf32>
    %cst = arith.constant 0.000000e+00 : f32
    %7 = vector.broadcast %cst : f32 to vector<8x128xf32>
    %8 = arith.maximumf %6, %7 : vector<8x128xf32>
    %c0_3 = arith.constant 0 : index
    %9 = memref.load %arg3[%c0_3] : memref<16xf32, #tpu.memory_space<smem>>
    %10 = vector.broadcast %9 : f32 to vector<8x128xf32>
    %11 = arith.mulf %8, %10 : vector<8x128xf32>
    %c0_4 = arith.constant 0 : index
    %12 = memref.load %arg4[%c0_4] : memref<1xf32, #tpu.memory_space<smem>>
    %13 = vector.broadcast %12 : f32 to vector<8x128xf32>
    %14 = arith.addf %11, %13 : vector<8x128xf32>
    %c1 = arith.constant 1 : index
    %15 = memref.load %arg1[%c1] : memref<16xf32, #tpu.memory_space<smem>>
    %16 = vector.broadcast %15 : f32 to vector<8x128xf32>
    %17 = arith.mulf %0, %16 : vector<8x128xf32>
    %c1_5 = arith.constant 1 : index
    %18 = memref.load %arg2[%c1_5] : memref<16xf32, #tpu.memory_space<smem>>
    %19 = vector.broadcast %18 : f32 to vector<8x128xf32>
    %20 = arith.addf %17, %19 : vector<8x128xf32>
    %cst_6 = arith.constant 0.000000e+00 : f32
    %21 = vector.broadcast %cst_6 : f32 to vector<8x128xf32>
    %22 = arith.maximumf %20, %21 : vector<8x128xf32>
    %c1_7 = arith.constant 1 : index
    %23 = memref.load %arg3[%c1_7] : memref<16xf32, #tpu.memory_space<smem>>
    %24 = vector.broadcast %23 : f32 to vector<8x128xf32>
    %25 = arith.mulf %22, %24 : vector<8x128xf32>
    %26 = arith.addf %14, %25 : vector<8x128xf32>
    %c2 = arith.constant 2 : index
    %27 = memref.load %arg1[%c2] : memref<16xf32, #tpu.memory_space<smem>>
    %28 = vector.broadcast %27 : f32 to vector<8x128xf32>
    %29 = arith.mulf %0, %28 : vector<8x128xf32>
    %c2_8 = arith.constant 2 : index
    %30 = memref.load %arg2[%c2_8] : memref<16xf32, #tpu.memory_space<smem>>
    %31 = vector.broadcast %30 : f32 to vector<8x128xf32>
    %32 = arith.addf %29, %31 : vector<8x128xf32>
    %cst_9 = arith.constant 0.000000e+00 : f32
    %33 = vector.broadcast %cst_9 : f32 to vector<8x128xf32>
    %34 = arith.maximumf %32, %33 : vector<8x128xf32>
    %c2_10 = arith.constant 2 : index
    %35 = memref.load %arg3[%c2_10] : memref<16xf32, #tpu.memory_space<smem>>
    %36 = vector.broadcast %35 : f32 to vector<8x128xf32>
    %37 = arith.mulf %34, %36 : vector<8x128xf32>
    %38 = arith.addf %26, %37 : vector<8x128xf32>
    %c3 = arith.constant 3 : index
    %39 = memref.load %arg1[%c3] : memref<16xf32, #tpu.memory_space<smem>>
    %40 = vector.broadcast %39 : f32 to vector<8x128xf32>
    %41 = arith.mulf %0, %40 : vector<8x128xf32>
    %c3_11 = arith.constant 3 : index
    %42 = memref.load %arg2[%c3_11] : memref<16xf32, #tpu.memory_space<smem>>
    %43 = vector.broadcast %42 : f32 to vector<8x128xf32>
    %44 = arith.addf %41, %43 : vector<8x128xf32>
    %cst_12 = arith.constant 0.000000e+00 : f32
    %45 = vector.broadcast %cst_12 : f32 to vector<8x128xf32>
    %46 = arith.maximumf %44, %45 : vector<8x128xf32>
    %c3_13 = arith.constant 3 : index
    %47 = memref.load %arg3[%c3_13] : memref<16xf32, #tpu.memory_space<smem>>
    %48 = vector.broadcast %47 : f32 to vector<8x128xf32>
    %49 = arith.mulf %46, %48 : vector<8x128xf32>
    %50 = arith.addf %38, %49 : vector<8x128xf32>
    %c4 = arith.constant 4 : index
    %51 = memref.load %arg1[%c4] : memref<16xf32, #tpu.memory_space<smem>>
    %52 = vector.broadcast %51 : f32 to vector<8x128xf32>
    %53 = arith.mulf %0, %52 : vector<8x128xf32>
    %c4_14 = arith.constant 4 : index
    %54 = memref.load %arg2[%c4_14] : memref<16xf32, #tpu.memory_space<smem>>
    %55 = vector.broadcast %54 : f32 to vector<8x128xf32>
    %56 = arith.addf %53, %55 : vector<8x128xf32>
    %cst_15 = arith.constant 0.000000e+00 : f32
    %57 = vector.broadcast %cst_15 : f32 to vector<8x128xf32>
    %58 = arith.maximumf %56, %57 : vector<8x128xf32>
    %c4_16 = arith.constant 4 : index
    %59 = memref.load %arg3[%c4_16] : memref<16xf32, #tpu.memory_space<smem>>
    %60 = vector.broadcast %59 : f32 to vector<8x128xf32>
    %61 = arith.mulf %58, %60 : vector<8x128xf32>
    %62 = arith.addf %50, %61 : vector<8x128xf32>
    %c5 = arith.constant 5 : index
    %63 = memref.load %arg1[%c5] : memref<16xf32, #tpu.memory_space<smem>>
    %64 = vector.broadcast %63 : f32 to vector<8x128xf32>
    %65 = arith.mulf %0, %64 : vector<8x128xf32>
    %c5_17 = arith.constant 5 : index
    %66 = memref.load %arg2[%c5_17] : memref<16xf32, #tpu.memory_space<smem>>
    %67 = vector.broadcast %66 : f32 to vector<8x128xf32>
    %68 = arith.addf %65, %67 : vector<8x128xf32>
    %cst_18 = arith.constant 0.000000e+00 : f32
    %69 = vector.broadcast %cst_18 : f32 to vector<8x128xf32>
    %70 = arith.maximumf %68, %69 : vector<8x128xf32>
    %c5_19 = arith.constant 5 : index
    %71 = memref.load %arg3[%c5_19] : memref<16xf32, #tpu.memory_space<smem>>
    %72 = vector.broadcast %71 : f32 to vector<8x128xf32>
    %73 = arith.mulf %70, %72 : vector<8x128xf32>
    %74 = arith.addf %62, %73 : vector<8x128xf32>
    %c6 = arith.constant 6 : index
    %75 = memref.load %arg1[%c6] : memref<16xf32, #tpu.memory_space<smem>>
    %76 = vector.broadcast %75 : f32 to vector<8x128xf32>
    %77 = arith.mulf %0, %76 : vector<8x128xf32>
    %c6_20 = arith.constant 6 : index
    %78 = memref.load %arg2[%c6_20] : memref<16xf32, #tpu.memory_space<smem>>
    %79 = vector.broadcast %78 : f32 to vector<8x128xf32>
    %80 = arith.addf %77, %79 : vector<8x128xf32>
    %cst_21 = arith.constant 0.000000e+00 : f32
    %81 = vector.broadcast %cst_21 : f32 to vector<8x128xf32>
    %82 = arith.maximumf %80, %81 : vector<8x128xf32>
    %c6_22 = arith.constant 6 : index
    %83 = memref.load %arg3[%c6_22] : memref<16xf32, #tpu.memory_space<smem>>
    %84 = vector.broadcast %83 : f32 to vector<8x128xf32>
    %85 = arith.mulf %82, %84 : vector<8x128xf32>
    %86 = arith.addf %74, %85 : vector<8x128xf32>
    %c7 = arith.constant 7 : index
    %87 = memref.load %arg1[%c7] : memref<16xf32, #tpu.memory_space<smem>>
    %88 = vector.broadcast %87 : f32 to vector<8x128xf32>
    %89 = arith.mulf %0, %88 : vector<8x128xf32>
    %c7_23 = arith.constant 7 : index
    %90 = memref.load %arg2[%c7_23] : memref<16xf32, #tpu.memory_space<smem>>
    %91 = vector.broadcast %90 : f32 to vector<8x128xf32>
    %92 = arith.addf %89, %91 : vector<8x128xf32>
    %cst_24 = arith.constant 0.000000e+00 : f32
    %93 = vector.broadcast %cst_24 : f32 to vector<8x128xf32>
    %94 = arith.maximumf %92, %93 : vector<8x128xf32>
    %c7_25 = arith.constant 7 : index
    %95 = memref.load %arg3[%c7_25] : memref<16xf32, #tpu.memory_space<smem>>
    %96 = vector.broadcast %95 : f32 to vector<8x128xf32>
    %97 = arith.mulf %94, %96 : vector<8x128xf32>
    %98 = arith.addf %86, %97 : vector<8x128xf32>
    %c8 = arith.constant 8 : index
    %99 = memref.load %arg1[%c8] : memref<16xf32, #tpu.memory_space<smem>>
    %100 = vector.broadcast %99 : f32 to vector<8x128xf32>
    %101 = arith.mulf %0, %100 : vector<8x128xf32>
    %c8_26 = arith.constant 8 : index
    %102 = memref.load %arg2[%c8_26] : memref<16xf32, #tpu.memory_space<smem>>
    %103 = vector.broadcast %102 : f32 to vector<8x128xf32>
    %104 = arith.addf %101, %103 : vector<8x128xf32>
    %cst_27 = arith.constant 0.000000e+00 : f32
    %105 = vector.broadcast %cst_27 : f32 to vector<8x128xf32>
    %106 = arith.maximumf %104, %105 : vector<8x128xf32>
    %c8_28 = arith.constant 8 : index
    %107 = memref.load %arg3[%c8_28] : memref<16xf32, #tpu.memory_space<smem>>
    %108 = vector.broadcast %107 : f32 to vector<8x128xf32>
    %109 = arith.mulf %106, %108 : vector<8x128xf32>
    %110 = arith.addf %98, %109 : vector<8x128xf32>
    %c9 = arith.constant 9 : index
    %111 = memref.load %arg1[%c9] : memref<16xf32, #tpu.memory_space<smem>>
    %112 = vector.broadcast %111 : f32 to vector<8x128xf32>
    %113 = arith.mulf %0, %112 : vector<8x128xf32>
    %c9_29 = arith.constant 9 : index
    %114 = memref.load %arg2[%c9_29] : memref<16xf32, #tpu.memory_space<smem>>
    %115 = vector.broadcast %114 : f32 to vector<8x128xf32>
    %116 = arith.addf %113, %115 : vector<8x128xf32>
    %cst_30 = arith.constant 0.000000e+00 : f32
    %117 = vector.broadcast %cst_30 : f32 to vector<8x128xf32>
    %118 = arith.maximumf %116, %117 : vector<8x128xf32>
    %c9_31 = arith.constant 9 : index
    %119 = memref.load %arg3[%c9_31] : memref<16xf32, #tpu.memory_space<smem>>
    %120 = vector.broadcast %119 : f32 to vector<8x128xf32>
    %121 = arith.mulf %118, %120 : vector<8x128xf32>
    %122 = arith.addf %110, %121 : vector<8x128xf32>
    %c10 = arith.constant 10 : index
    %123 = memref.load %arg1[%c10] : memref<16xf32, #tpu.memory_space<smem>>
    %124 = vector.broadcast %123 : f32 to vector<8x128xf32>
    %125 = arith.mulf %0, %124 : vector<8x128xf32>
    %c10_32 = arith.constant 10 : index
    %126 = memref.load %arg2[%c10_32] : memref<16xf32, #tpu.memory_space<smem>>
    %127 = vector.broadcast %126 : f32 to vector<8x128xf32>
    %128 = arith.addf %125, %127 : vector<8x128xf32>
    %cst_33 = arith.constant 0.000000e+00 : f32
    %129 = vector.broadcast %cst_33 : f32 to vector<8x128xf32>
    %130 = arith.maximumf %128, %129 : vector<8x128xf32>
    %c10_34 = arith.constant 10 : index
    %131 = memref.load %arg3[%c10_34] : memref<16xf32, #tpu.memory_space<smem>>
    %132 = vector.broadcast %131 : f32 to vector<8x128xf32>
    %133 = arith.mulf %130, %132 : vector<8x128xf32>
    %134 = arith.addf %122, %133 : vector<8x128xf32>
    %c11 = arith.constant 11 : index
    %135 = memref.load %arg1[%c11] : memref<16xf32, #tpu.memory_space<smem>>
    %136 = vector.broadcast %135 : f32 to vector<8x128xf32>
    %137 = arith.mulf %0, %136 : vector<8x128xf32>
    %c11_35 = arith.constant 11 : index
    %138 = memref.load %arg2[%c11_35] : memref<16xf32, #tpu.memory_space<smem>>
    %139 = vector.broadcast %138 : f32 to vector<8x128xf32>
    %140 = arith.addf %137, %139 : vector<8x128xf32>
    %cst_36 = arith.constant 0.000000e+00 : f32
    %141 = vector.broadcast %cst_36 : f32 to vector<8x128xf32>
    %142 = arith.maximumf %140, %141 : vector<8x128xf32>
    %c11_37 = arith.constant 11 : index
    %143 = memref.load %arg3[%c11_37] : memref<16xf32, #tpu.memory_space<smem>>
    %144 = vector.broadcast %143 : f32 to vector<8x128xf32>
    %145 = arith.mulf %142, %144 : vector<8x128xf32>
    %146 = arith.addf %134, %145 : vector<8x128xf32>
    %c12 = arith.constant 12 : index
    %147 = memref.load %arg1[%c12] : memref<16xf32, #tpu.memory_space<smem>>
    %148 = vector.broadcast %147 : f32 to vector<8x128xf32>
    %149 = arith.mulf %0, %148 : vector<8x128xf32>
    %c12_38 = arith.constant 12 : index
    %150 = memref.load %arg2[%c12_38] : memref<16xf32, #tpu.memory_space<smem>>
    %151 = vector.broadcast %150 : f32 to vector<8x128xf32>
    %152 = arith.addf %149, %151 : vector<8x128xf32>
    %cst_39 = arith.constant 0.000000e+00 : f32
    %153 = vector.broadcast %cst_39 : f32 to vector<8x128xf32>
    %154 = arith.maximumf %152, %153 : vector<8x128xf32>
    %c12_40 = arith.constant 12 : index
    %155 = memref.load %arg3[%c12_40] : memref<16xf32, #tpu.memory_space<smem>>
    %156 = vector.broadcast %155 : f32 to vector<8x128xf32>
    %157 = arith.mulf %154, %156 : vector<8x128xf32>
    %158 = arith.addf %146, %157 : vector<8x128xf32>
    %c13 = arith.constant 13 : index
    %159 = memref.load %arg1[%c13] : memref<16xf32, #tpu.memory_space<smem>>
    %160 = vector.broadcast %159 : f32 to vector<8x128xf32>
    %161 = arith.mulf %0, %160 : vector<8x128xf32>
    %c13_41 = arith.constant 13 : index
    %162 = memref.load %arg2[%c13_41] : memref<16xf32, #tpu.memory_space<smem>>
    %163 = vector.broadcast %162 : f32 to vector<8x128xf32>
    %164 = arith.addf %161, %163 : vector<8x128xf32>
    %cst_42 = arith.constant 0.000000e+00 : f32
    %165 = vector.broadcast %cst_42 : f32 to vector<8x128xf32>
    %166 = arith.maximumf %164, %165 : vector<8x128xf32>
    %c13_43 = arith.constant 13 : index
    %167 = memref.load %arg3[%c13_43] : memref<16xf32, #tpu.memory_space<smem>>
    %168 = vector.broadcast %167 : f32 to vector<8x128xf32>
    %169 = arith.mulf %166, %168 : vector<8x128xf32>
    %170 = arith.addf %158, %169 : vector<8x128xf32>
    %c14 = arith.constant 14 : index
    %171 = memref.load %arg1[%c14] : memref<16xf32, #tpu.memory_space<smem>>
    %172 = vector.broadcast %171 : f32 to vector<8x128xf32>
    %173 = arith.mulf %0, %172 : vector<8x128xf32>
    %c14_44 = arith.constant 14 : index
    %174 = memref.load %arg2[%c14_44] : memref<16xf32, #tpu.memory_space<smem>>
    %175 = vector.broadcast %174 : f32 to vector<8x128xf32>
    %176 = arith.addf %173, %175 : vector<8x128xf32>
    %cst_45 = arith.constant 0.000000e+00 : f32
    %177 = vector.broadcast %cst_45 : f32 to vector<8x128xf32>
    %178 = arith.maximumf %176, %177 : vector<8x128xf32>
    %c14_46 = arith.constant 14 : index
    %179 = memref.load %arg3[%c14_46] : memref<16xf32, #tpu.memory_space<smem>>
    %180 = vector.broadcast %179 : f32 to vector<8x128xf32>
    %181 = arith.mulf %178, %180 : vector<8x128xf32>
    %182 = arith.addf %170, %181 : vector<8x128xf32>
    %c15 = arith.constant 15 : index
    %183 = memref.load %arg1[%c15] : memref<16xf32, #tpu.memory_space<smem>>
    %184 = vector.broadcast %183 : f32 to vector<8x128xf32>
    %185 = arith.mulf %0, %184 : vector<8x128xf32>
    %c15_47 = arith.constant 15 : index
    %186 = memref.load %arg2[%c15_47] : memref<16xf32, #tpu.memory_space<smem>>
    %187 = vector.broadcast %186 : f32 to vector<8x128xf32>
    %188 = arith.addf %185, %187 : vector<8x128xf32>
    %cst_48 = arith.constant 0.000000e+00 : f32
    %189 = vector.broadcast %cst_48 : f32 to vector<8x128xf32>
    %190 = arith.maximumf %188, %189 : vector<8x128xf32>
    %c15_49 = arith.constant 15 : index
    %191 = memref.load %arg3[%c15_49] : memref<16xf32, #tpu.memory_space<smem>>
    %192 = vector.broadcast %191 : f32 to vector<8x128xf32>
    %193 = arith.mulf %190, %192 : vector<8x128xf32>
    %194 = arith.addf %182, %193 : vector<8x128xf32>
    %c0_50 = arith.constant 0 : index
    %c0_51 = arith.constant 0 : index
    %195 = vector.load %arg6[%c0_50, %c0_51] : memref<8x128xf32, #tpu.memory_space<vmem>>, vector<8x128xf32>
    tpu.vector_store %arg6[%c0_50, %c0_51], %194 {strides = array<i32>} : memref<8x128xf32, #tpu.memory_space<vmem>>, vector<8x128xf32>,
    return
  }
  func.func @transform_0(%arg0: i32) -> i32 {
    %c0_i32 = arith.constant 0 : i32
    %c0_i32_0 = arith.constant 0 : i32
    return %c0_i32 : i32
  }
  func.func @transform_1(%arg0: i32) -> i32 {
    %c0_i32 = arith.constant 0 : i32
    %c0_i32_0 = arith.constant 0 : i32
    return %c0_i32 : i32
  }
  func.func @transform_2(%arg0: i32) -> i32 {
    %c0_i32 = arith.constant 0 : i32
    %c0_i32_0 = arith.constant 0 : i32
    return %c0_i32 : i32
  }
  func.func @transform_3(%arg0: i32) -> i32 {
    %c0_i32 = arith.constant 0 : i32
    %c0_i32_0 = arith.constant 0 : i32
    return %c0_i32 : i32
  }
  func.func @transform_4(%arg0: i32) -> (i32, i32) {
    %c0_i32 = arith.constant 0 : i32
    %c0_i32_0 = arith.constant 0 : i32
    return %arg0, %c0_i32 : i32, i32
  }
  func.func @transform_5(%arg0: i32) -> (i32, i32) {
    %c0_i32 = arith.constant 0 : i32
    %c0_i32_0 = arith.constant 0 : i32
    return %arg0, %c0_i32 : i32, i32
  }
}

</mosaic_0001>

<llo_original>
// kernel: tpu_custom_call.1
$region0: #{tpu_custom_call.1}
  #allocation0 [shape = 'u32[]', space=smem, size = 0x4, offset = 0x4, fixed_abs, tag = 'smem constant byte address 0x4 - core index']
  #allocation1 [shape = 'u32[72,128]{1,0:T(1,128)}', space=vmem, size = 0x9000, scoped, tag = 'internal scratch']
  #allocation2 [shape = 'f32[1]{0:T(128)S(6)}', space=smem, size = 0x200, scoped, tag = 'scoped memory for tpu_custom_call.1']
  %s0 = inlined_call_operand.vmem [shape: f32[16], index: 0, kind: input, shape index: {}]
  %s1 = inlined_call_operand.vmem [shape: f32[16], index: 1, kind: input, shape index: {}]
  %s2 = inlined_call_operand.vmem [shape: f32[16], index: 2, kind: input, shape index: {}]
  %s3 = inlined_call_operand.<no memory space> [shape: f32[1], index: 3, kind: input, shape index: {}]
  %s4 = inlined_call_operand.vmem [shape: f32[1,128], index: 4, kind: input, shape index: {}]
  %s5 = inlined_call_operand.hbm [shape: f32[1,128], index: 5, kind: output, shape index: {}]
  %s6 = sld [smem:[#allocation0]]
  $region42: #{tpu_custom_call.1} parent=0
    _
  %s8 = ssub.s32 1, %s6
  %s9 = scalar_select 0, %s8, %s6
  %10 = sst [smem:[#allocation2]] %s3
  $region1: #{tpu_custom_call.1} parent=0
    #allocation3 [shape = 'u8[512]{0}', space=smem, size = 0x200, scoped, tag = 'input window, operand 0, single buffered']
    #allocation4 [shape = 's32[1]{0}', space=sflag, size = 0x4, scoped, tag = 'scoped memory for tpu_custom_call.1']
    #allocation5 [shape = 's32[1]{0}', space=sflag, size = 0x4, scoped, tag = 'scoped memory for tpu_custom_call.1']
    #allocation6 [shape = 'u8[512]{0}', space=smem, size = 0x200, scoped, tag = 'input window, operand 1, single buffered']
    #allocation7 [shape = 's32[1]{0}', space=sflag, size = 0x4, scoped, tag = 'scoped memory for tpu_custom_call.1']
    #allocation8 [shape = 'u8[512]{0}', space=smem, size = 0x200, scoped, tag = 'input window, operand 2, single buffered']
    #allocation9 [shape = 'u8[4096]{0}', space=vmem, size = 0x1000, scoped, tag = 'output window, operand 0, single buffered']
    %11 = vsyncpa [#allocation5], 0
    %12 = vsyncpa [#allocation7], 0
    %13 = vsyncpa [#allocation4], 0
    // Predicated region
    $region2: #{tpu_custom_call.1} parent=1 // pred_check
      _
    $region3: #{tpu_custom_call.1} parent=1 // pred_check_branch
      %15 = sbr.rel (0) target = $region5
    $region4: #{tpu_custom_call.1} parent=1 // pred_region
      %17 = vsyncadd [#allocation5], 0
      %s19 = sshll.u32 %s0, 4
      %s20 = int_to_ptr.vmem [resolvable:$true] %s19
      %22 = dma.vmem_to_smem %s20, 16, [#allocation3], [#allocation5]
    $region5: #{tpu_custom_call.1} parent=1 // pred_fallthru
      _
    // Predicated region
    $region6: #{tpu_custom_call.1} parent=1 // pred_check
      _
    $region7: #{tpu_custom_call.1} parent=1 // pred_check_branch
      %24 = sbr.rel (0) target = $region9
    $region8: #{tpu_custom_call.1} parent=1 // pred_region
      %26 = vsyncadd [#allocation7], 0
      %s28 = sshll.u32 %s1, 4
      %s29 = int_to_ptr.vmem [resolvable:$true] %s28
      %31 = dma.vmem_to_smem %s29, 16, [#allocation6], [#allocation7]
    $region9: #{tpu_custom_call.1} parent=1 // pred_fallthru
      _
    // Predicated region
    $region10: #{tpu_custom_call.1} parent=1 // pred_check
      _
    $region11: #{tpu_custom_call.1} parent=1 // pred_check_branch
      %33 = sbr.rel (0) target = $region13
    $region12: #{tpu_custom_call.1} parent=1 // pred_region
      %35 = vsyncadd [#allocation7], 0
      %s37 = sshll.u32 %s2, 4
      %s38 = int_to_ptr.vmem [resolvable:$true] %s37
      %40 = dma.vmem_to_smem %s38, 16, [#allocation8], [#allocation7]
    $region13: #{tpu_custom_call.1} parent=1 // pred_fallthru
      _
    // Predicated region
    $region14: #{tpu_custom_call.1} parent=1 // pred_check
      _
    $region15: #{tpu_custom_call.1} parent=1 // pred_check_branch
      %42 = sbr.rel (0) target = $region17
    $region16: #{tpu_custom_call.1} parent=1 // pred_region
      _
    $region17: #{tpu_custom_call.1} parent=1 // pred_fallthru
      _
    // Predicated region
    $region18: #{tpu_custom_call.1} parent=1 // pred_check
      _
    $region19: #{tpu_custom_call.1} parent=1 // pred_check_branch
      %44 = sbr.rel (0) target = $region21
    $region20: #{tpu_custom_call.1} parent=1 // pred_region
      _
    $region21: #{tpu_custom_call.1} parent=1 // pred_fallthru
      _
    // Predicated region
    $region22: #{tpu_custom_call.1} parent=1 // pred_check
      _
    $region23: #{tpu_custom_call.1} parent=1 // pred_check_branch
      %46 = sbr.rel (0) target = $region25
    $region24: #{tpu_custom_call.1} parent=1 // pred_region
      %48 = dma.done [#allocation5], 16
    $region25: #{tpu_custom_call.1} parent=1 // pred_fallthru
      _
    // Predicated region
    $region26: #{tpu_custom_call.1} parent=1 // pred_check
      _
    $region27: #{tpu_custom_call.1} parent=1 // pred_check_branch
      %50 = sbr.rel (0) target = $region29
    $region28: #{tpu_custom_call.1} parent=1 // pred_region
      %52 = dma.done [#allocation7], 16
    $region29: #{tpu_custom_call.1} parent=1 // pred_fallthru
      _
    // Predicated region
    $region30: #{tpu_custom_call.1} parent=1 // pred_check
      _
    $region31: #{tpu_custom_call.1} parent=1 // pred_check_branch
      %54 = sbr.rel (0) target = $region33
    $region32: #{tpu_custom_call.1} parent=1 // pred_region
      %56 = dma.done [#allocation7], 16
    $region33: #{tpu_custom_call.1} parent=1 // pred_fallthru
      _
    %57 = sfence
    %v58 = vld [vmem:[%s4] sm:$0xff]
    %s59 = sld [smem:[#allocation3]]
    %v60 = vstv %s59
    %v61 = vmul.f32 %v58, %v60
    %s62 = sld [smem:[#allocation6]]
    %v63 = vstv %s62
    %v64 = vadd.f32 %v61, %v63
    %v65 = vmax.f32 %v64, 0.0
    %s66 = sld [smem:[#allocation8]]
    %v67 = vstv %s66
    %v68 = vmul.f32 %v65, %v67
    %s69 = sld [smem:[#allocation2]]
    %v70 = vstv %s69
    %v71 = vadd.f32 %v68, %v70
    %s72 = sld [smem:[#allocation3 + $0x1]]
    %v73 = vstv %s72
    %v74 = vmul.f32 %v58, %v73
    %s75 = sld [smem:[#allocation6 + $0x1]]
    %v76 = vstv %s75
    %v77 = vadd.f32 %v74, %v76
    %v78 = vmax.f32 %v77, 0.0
    %s79 = sld [smem:[#allocation8 + $0x1]]
    %v80 = vstv %s79
    %v81 = vmul.f32 %v78, %v80
    %v82 = vadd.f32 %v71, %v81
    %s83 = sld [smem:[#allocation3 + $0x2]]
    %v84 = vstv %s83
    %v85 = vmul.f32 %v58, %v84
    %s86 = sld [smem:[#allocation6 + $0x2]]
    %v87 = vstv %s86
    %v88 = vadd.f32 %v85, %v87
    %v89 = vmax.f32 %v88, 0.0
    %s90 = sld [smem:[#allocation8 + $0x2]]
    %v91 = vstv %s90
    %v92 = vmul.f32 %v89, %v91
    %v93 = vadd.f32 %v82, %v92
    %s94 = sld [smem:[#allocation3 + $0x3]]
    %v95 = vstv %s94
    %v96 = vmul.f32 %v58, %v95
    %s97 = sld [smem:[#allocation6 + $0x3]]
    %v98 = vstv %s97
    %v99 = vadd.f32 %v96, %v98
    %v100 = vmax.f32 %v99, 0.0
    %s101 = sld [smem:[#allocation8 + $0x3]]
    %v102 = vstv %s101
    %v103 = vmul.f32 %v100, %v102
    %v104 = vadd.f32 %v93, %v103
    %s105 = sld [smem:[#allocation3 + $0x4]]
    %v106 = vstv %s105
    %v107 = vmul.f32 %v58, %v106
    %s108 = sld [smem:[#allocation6 + $0x4]]
    %v109 = vstv %s108
    %v110 = vadd.f32 %v107, %v109
    %v111 = vmax.f32 %v110, 0.0
    %s112 = sld [smem:[#allocation8 + $0x4]]
    %v113 = vstv %s112
    %v114 = vmul.f32 %v111, %v113
    %v115 = vadd.f32 %v104, %v114
    %s116 = sld [smem:[#allocation3 + $0x5]]
    %v117 = vstv %s116
    %v118 = vmul.f32 %v58, %v117
    %s119 = sld [smem:[#allocation6 + $0x5]]
    %v120 = vstv %s119
    %v121 = vadd.f32 %v118, %v120
    %v122 = vmax.f32 %v121, 0.0
    %s123 = sld [smem:[#allocation8 + $0x5]]
    %v124 = vstv %s123
    %v125 = vmul.f32 %v122, %v124
    %v126 = vadd.f32 %v115, %v125
    %s127 = sld [smem:[#allocation3 + $0x6]]
    %v128 = vstv %s127
    %v129 = vmul.f32 %v58, %v128
    %s130 = sld [smem:[#allocation6 + $0x6]]
    %v131 = vstv %s130
    %v132 = vadd.f32 %v129, %v131
    %v133 = vmax.f32 %v132, 0.0
    %s134 = sld [smem:[#allocation8 + $0x6]]
    %v135 = vstv %s134
    %v136 = vmul.f32 %v133, %v135
    %v137 = vadd.f32 %v126, %v136
    %s138 = sld [smem:[#allocation3 + $0x7]]
    %v139 = vstv %s138
    %v140 = vmul.f32 %v58, %v139
    %s141 = sld [smem:[#allocation6 + $0x7]]
    %v142 = vstv %s141
    %v143 = vadd.f32 %v140, %v142
    %v144 = vmax.f32 %v143, 0.0
    %s145 = sld [smem:[#allocation8 + $0x7]]
    %v146 = vstv %s145
    %v147 = vmul.f32 %v144, %v146
    %v148 = vadd.f32 %v137, %v147
    %s149 = sld [smem:[#allocation3 + $0x8]]
    %v150 = vstv %s149
    %v151 = vmul.f32 %v58, %v150
    %s152 = sld [smem:[#allocation6 + $0x8]]
    %v153 = vstv %s152
    %v154 = vadd.f32 %v151, %v153
    %v155 = vmax.f32 %v154, 0.0
    %s156 = sld [smem:[#allocation8 + $0x8]]
    %v157 = vstv %s156
    %v158 = vmul.f32 %v155, %v157
    %v159 = vadd.f32 %v148, %v158
    %s160 = sld [smem:[#allocation3 + $0x9]]
    %v161 = vstv %s160
    %v162 = vmul.f32 %v58, %v161
    %s163 = sld [smem:[#allocation6 + $0x9]]
    %v164 = vstv %s163
    %v165 = vadd.f32 %v162, %v164
    %v166 = vmax.f32 %v165, 0.0
    %s167 = sld [smem:[#allocation8 + $0x9]]
    %v168 = vstv %s167
    %v169 = vmul.f32 %v166, %v168
    %v170 = vadd.f32 %v159, %v169
    %s171 = sld [smem:[#allocation3 + $0xa]]
    %v172 = vstv %s171
    %v173 = vmul.f32 %v58, %v172
    %s174 = sld [smem:[#allocation6 + $0xa]]
    %v175 = vstv %s174
    %v176 = vadd.f32 %v173, %v175
    %v177 = vmax.f32 %v176, 0.0
    %s178 = sld [smem:[#allocation8 + $0xa]]
    %v179 = vstv %s178
    %v180 = vmul.f32 %v177, %v179
    %v181 = vadd.f32 %v170, %v180
    %s182 = sld [smem:[#allocation3 + $0xb]]
    %v183 = vstv %s182
    %v184 = vmul.f32 %v58, %v183
    %s185 = sld [smem:[#allocation6 + $0xb]]
    %v186 = vstv %s185
    %v187 = vadd.f32 %v184, %v186
    %v188 = vmax.f32 %v187, 0.0
    %s189 = sld [smem:[#allocation8 + $0xb]]
    %v190 = vstv %s189
    %v191 = vmul.f32 %v188, %v190
    %v192 = vadd.f32 %v181, %v191
    %s193 = sld [smem:[#allocation3 + $0xc]]
    %v194 = vstv %s193
    %v195 = vmul.f32 %v58, %v194
    %s196 = sld [smem:[#allocation6 + $0xc]]
    %v197 = vstv %s196
    %v198 = vadd.f32 %v195, %v197
    %v199 = vmax.f32 %v198, 0.0
    %s200 = sld [smem:[#allocation8 + $0xc]]
    %v201 = vstv %s200
    %v202 = vmul.f32 %v199, %v201
    %v203 = vadd.f32 %v192, %v202
    %s204 = sld [smem:[#allocation3 + $0xd]]
    %v205 = vstv %s204
    %v206 = vmul.f32 %v58, %v205
    %s207 = sld [smem:[#allocation6 + $0xd]]
    %v208 = vstv %s207
    %v209 = vadd.f32 %v206, %v208
    %v210 = vmax.f32 %v209, 0.0
    %s211 = sld [smem:[#allocation8 + $0xd]]
    %v212 = vstv %s211
    %v213 = vmul.f32 %v210, %v212
    %v214 = vadd.f32 %v203, %v213
    %s215 = sld [smem:[#allocation3 + $0xe]]
    %v216 = vstv %s215
    %v217 = vmul.f32 %v58, %v216
    %s218 = sld [smem:[#allocation6 + $0xe]]
    %v219 = vstv %s218
    %v220 = vadd.f32 %v217, %v219
    %v221 = vmax.f32 %v220, 0.0
    %s222 = sld [smem:[#allocation8 + $0xe]]
    %v223 = vstv %s222
    %v224 = vmul.f32 %v221, %v223
    %v225 = vadd.f32 %v214, %v224
    %s226 = sld [smem:[#allocation3 + $0xf]]
    %v227 = vstv %s226
    %v228 = vmul.f32 %v58, %v227
    %s229 = sld [smem:[#allocation6 + $0xf]]
    %v230 = vstv %s229
    %v231 = vadd.f32 %v228, %v230
    %v232 = vmax.f32 %v231, 0.0
    %s233 = sld [smem:[#allocation8 + $0xf]]
    %v234 = vstv %s233
    %v235 = vmul.f32 %v232, %v234
    %v236 = vadd.f32 %v225, %v235
    %237 = vst [vmem:[#allocation9] sm:$0xff] %v236
    // Predicated region
    $region34: #{tpu_custom_call.1} parent=1 // pred_check
      _
    $region35: #{tpu_custom_call.1} parent=1 // pred_check_branch
      %239 = sbr.rel (0) target = $region37
    $region36: #{tpu_custom_call.1} parent=1 // pred_region
      %241 = vsyncadd [#allocation4], 112
      %s242 = sshll.u32 [#allocation9], 4
      %s243 = int_to_ptr.vmem [resolvable:$true] %s242
      %s244 = sshll.u32 %s5, 4
      %s245 = int_to_ptr.hbm [resolvable:$true] %s244
      %250 = dma.vmem_to_hbm [thread:$0]  %s243, 16, %s245, [#allocation4], 16, 16, 1
    $region37: #{tpu_custom_call.1} parent=1 // pred_fallthru
      _
    // Predicated region
    $region38: #{tpu_custom_call.1} parent=1 // pred_check
      _
    $region39: #{tpu_custom_call.1} parent=1 // pred_check_branch
      %252 = sbr.rel (0) target = $region41
    $region40: #{tpu_custom_call.1} parent=1 // pred_region
      %254 = dma.done [#allocation4], 128
    $region41: #{tpu_custom_call.1} parent=1 // pred_fallthru
      _
    %255 = vsyncpa [#allocation4], 1
    %256 = vsyncpa [#allocation5], 1
    %257 = vsyncpa [#allocation7], 1

</llo_original>
